<compile_context>
chip_gen: v7x
topology: tpu7x:2x2x1
jax: 0.10.0
libtpu: 0.0.40
codegen_flags: <defaults>
</compile_context>

<pallas_src>
import jax
import jax.numpy as jnp
from jax import lax
from jax.experimental import pallas as pl
from jax.experimental.pallas import tpu as pltpu


def _round_up(x, m):
    return ((x + m - 1) // m) * m


def _idnet_kernel(s_ref, ns_ref, w1_ref, b1_ref, w2_ref, b2_ref, out_ref, x_ref):
    E = s_ref.shape[1]
    # Fuse the concat: build the [tm, 2E] input tile in VMEM scratch, casting
    # activations to the compute dtype here (no extra HBM pass in the wrapper).
    # One K=2E contraction fills the 256-deep MXU on v6e/v7x.
    x_ref[:, :E] = s_ref[...].astype(x_ref.dtype)
    x_ref[:, E:] = ns_ref[...].astype(x_ref.dtype)

    # hidden = relu([s, ns] @ W1^T + b1).  W1 is in native [H, 2E] layout;
    # contracting on axis 1 of both operands gives the transpose for free on
    # the MXU, accumulating in f32.
    h = lax.dot_general(
        x_ref[...], w1_ref[...],
        dimension_numbers=(((1,), (1,)), ((), ())),
        preferred_element_type=jnp.float32)
    h = jnp.maximum(h + b1_ref[...], 0.0)

    # TODO(synk): nn.Dropout(p=p_dropout) — p defaults to 0.0 (identity);
    # nonzero p would need pltpu.prng_seed/prng_random_bits here.

    # logits = hidden @ W2^T + b2.  W2 is native [A_pad, H]; same transposed
    # contraction, f32 accumulate, lane-dense (128-wide) output store.
    out = lax.dot_general(
        h.astype(w2_ref.dtype), w2_ref[...],
        dimension_numbers=(((1,), (1,)), ((), ())),
        preferred_element_type=jnp.float32)
    out_ref[...] = (out + b2_ref[...]).astype(out_ref.dtype)


def prepare_params(w1, b1, w2, b2, compute_dtype=jnp.bfloat16):
    """One-time parameter prep (hoist out of the step function).

    w1 : [H, 2E], b1 : [H], w2 : [A, H], b2 : [A]   (PyTorch [out, in] layout)
    Returns (w1c, b1r, w2p, b2p, num_actions).
    """
    H, two_e = w1.shape
    A, H2 = w2.shape
    assert H2 == H
    a_pad = _round_up(max(A, 1), 128)

    w1c = w1.astype(compute_dtype)                                   # [H, 2E]
    b1r = b1.reshape(1, H).astype(jnp.float32)                       # [1, H]
    w2p = jnp.zeros((a_pad, H), compute_dtype).at[:A, :].set(
        w2.astype(compute_dtype))                                    # [A_pad, H]
    b2p = jnp.zeros((1, a_pad), jnp.float32).at[0, :A].set(
        b2.astype(jnp.float32))                                      # [1, A_pad]
    return w1c, b1r, w2p, b2p, A


def minigrid_inverse_dynamics_prepared(state_emb, next_state_emb, prepared, *,
                                       tm=1024, return_padded=False):
    """Fast path: uses parameters produced once by `prepare_params`."""
    w1c, b1r, w2p, b2p, num_actions = prepared
    T, B, E = state_emb.shape
    H = w1c.shape[0]
    assert w1c.shape == (H, 2 * E)
    a_pad = w2p.shape[0]

    M = T * B
    s = state_emb.reshape(M, E)
    ns = next_state_emb.reshape(M, E)

    # Row-tile the flattened (T*B) axis.  Keep tm a multiple of 8 and cap it at
    # cdiv(M, 2) so there are always >= 2 grid steps (both v7x TensorCores get
    # work).  No wrapper-side padding: Pallas masks the partial last tile, and
    # those rows never reach the (M, A_pad) output.
    tm = max(8, min(tm, _round_up(pl.cdiv(M, 2), 8)))
    grid = (pl.cdiv(M, tm),)

    out = pl.pallas_call(
        _idnet_kernel,
        out_shape=jax.ShapeDtypeStruct((M, a_pad), jnp.float32),
        grid_spec=pltpu.PrefetchScalarGridSpec(
            num_scalar_prefetch=0,
            grid=grid,
            in_specs=[
                pl.BlockSpec((tm, E), lambda i: (i, 0)),       # state rows
                pl.BlockSpec((tm, E), lambda i: (i, 0)),       # next-state rows
                pl.BlockSpec((H, 2 * E), lambda i: (0, 0)),    # W1 (resident)
                pl.BlockSpec((1, H), lambda i: (0, 0)),        # b1
                pl.BlockSpec((a_pad, H), lambda i: (0, 0)),    # W2 (padded, resident)
                pl.BlockSpec((1, a_pad), lambda i: (0, 0)),    # b2 (padded)
            ],
            out_specs=pl.BlockSpec((tm, a_pad), lambda i: (i, 0)),
            scratch_shapes=[pltpu.VMEM((tm, 2 * E), w1c.dtype)],
        ),
        compiler_params=pltpu.CompilerParams(
            dimension_semantics=("parallel",)),
    )(s, ns, w1c, b1r, w2p, b2p)

    if return_padded:
        return out.reshape(T, B, a_pad)
    return out[:, :num_actions].reshape(T, B, num_actions)


def minigrid_inverse_dynamics(state_emb, next_state_emb, w1, b1, w2, b2, *,
                              compute_dtype=jnp.bfloat16, tm=1024,
                              return_padded=False):
    """Convenience wrapper: prep + forward.  For repeated calls (training),
    call `prepare_params` once and use `minigrid_inverse_dynamics_prepared`."""
    prepared = prepare_params(w1, b1, w2, b2, compute_dtype=compute_dtype)
    return minigrid_inverse_dynamics_prepared(
        state_emb, next_state_emb, prepared, tm=tm, return_padded=return_padded)


def _reference(state_emb, next_state_emb, w1, b1, w2, b2):
    """Pure-JAX f32 reference matching the PyTorch forward."""
    x = jnp.concatenate([state_emb, next_state_emb], axis=2)     # [T, B, 2E]
    h = jnp.maximum(jnp.einsum('tbe,he->tbh', x, w1) + b1, 0.0)  # [T, B, H]
    return jnp.einsum('tbh,ah->tba', h, w2) + b2                 # [T, B, A]


if __name__ == "__main__":
    key = jax.random.PRNGKey(0)
    T, B, E, H, A = 8, 2, 128, 256, 7   # emb_size=128, hidden=256, num_actions=7

    ks = jax.random.split(key, 6)
    state_emb = jax.random.normal(ks[0], (T, B, E), jnp.float32)
    next_state_emb = jax.random.normal(ks[1], (T, B, E), jnp.float32)
    w1 = jax.random.normal(ks[2], (H, 2 * E), jnp.float32) * 0.05
    b1 = jax.random.normal(ks[3], (H,), jnp.float32) * 0.05
    w2 = jax.random.normal(ks[4], (A, H), jnp.float32) * 0.05
    b2 = jax.random.normal(ks[5], (A,), jnp.float32) * 0.05

    ref = _reference(state_emb, next_state_emb, w1, b1, w2, b2)

    # 1) Structural check: f32 compute path must match the reference tightly.
    prepared_f32 = prepare_params(w1, b1, w2, b2, compute_dtype=jnp.float32)
    out_f32 = minigrid_inverse_dynamics_prepared(
        state_emb, next_state_emb, prepared_f32)
    out_f32 = jax.block_until_ready(out_f32)
    assert out_f32.shape == (T, B, A), out_f32.shape
    assert jnp.allclose(out_f32, ref, rtol=1e-4, atol=1e-4), (
        float(jnp.max(jnp.abs(out_f32 - ref))))

    # 2) Default fast path: bf16 MXU operands with f32 accumulation
    #    (prep hoisted; would be reused across steps in a real loop).
    prepared_bf16 = prepare_params(w1, b1, w2, b2, compute_dtype=jnp.bfloat16)
    out_bf16 = minigrid_inverse_dynamics_prepared(
        state_emb, next_state_emb, prepared_bf16)
    out_bf16 = jax.block_until_ready(out_bf16)
    assert out_bf16.shape == (T, B, A), out_bf16.shape
    assert jnp.allclose(out_bf16, ref, rtol=3e-2, atol=3e-2), (
        float(jnp.max(jnp.abs(out_bf16 - ref))))

    print("KERNEL_OK")
</pallas_src>

<mosaic_0001>
module attributes {stable_mosaic.version = 11 : i64} {
  func.func @_idnet_kernel(%arg0: i32, %arg1: memref<8x128xf32, #tpu.memory_space<vmem>>, %arg2: memref<8x128xf32, #tpu.memory_space<vmem>>, %arg3: memref<256x256xf32, #tpu.memory_space<vmem>>, %arg4: memref<1x256xf32, #tpu.memory_space<vmem>>, %arg5: memref<128x256xf32, #tpu.memory_space<vmem>>, %arg6: memref<1x128xf32, #tpu.memory_space<vmem>>, %arg7: memref<8x128xf32, #tpu.memory_space<vmem>>, %arg8: memref<8x256xf32, #tpu.memory_space<vmem>>) attributes {dimension_semantics = [#tpu.dimension_semantics<parallel>], iteration_bounds = array<i64: 2>, scalar_prefetch = 0 : i64, scratch_operands = 1 : i64, tpu.core_type = #tpu.core_type<tc>, window_params = [{transform_indices = @transform_0, window_bounds = array<i64: 8, 128>}, {transform_indices = @transform_1, window_bounds = array<i64: 8, 128>}, {pipeline_mode = #tpu.pipeline_mode<synchronous>, transform_indices = @transform_2, window_bounds = array<i64: 256, 256>}, {pipeline_mode = #tpu.pipeline_mode<synchronous>, transform_indices = @transform_3, window_bounds = array<i64: 1, 256>}, {pipeline_mode = #tpu.pipeline_mode<synchronous>, transform_indices = @transform_4, window_bounds = array<i64: 128, 256>}, {pipeline_mode = #tpu.pipeline_mode<synchronous>, transform_indices = @transform_5, window_bounds = array<i64: 1, 128>}, {transform_indices = @transform_6, window_bounds = array<i64: 8, 128>}]} {
    %c0 = arith.constant 0 : index
    %c0_0 = arith.constant 0 : index
    %0 = vector.load %arg1[%c0, %c0_0] : memref<8x128xf32, #tpu.memory_space<vmem>>, vector<8x128xf32>
    %c0_1 = arith.constant 0 : index
    %c0_2 = arith.constant 0 : index
    %1 = vector.load %arg8[%c0_1, %c0_2] : memref<8x256xf32, #tpu.memory_space<vmem>>, vector<8x128xf32>
    tpu.vector_store %arg8[%c0_1, %c0_2], %0 {strides = array<i32>} : memref<8x256xf32, #tpu.memory_space<vmem>>, vector<8x128xf32>,
    %c0_3 = arith.constant 0 : index
    %c0_4 = arith.constant 0 : index
    %2 = vector.load %arg2[%c0_3, %c0_4] : memref<8x128xf32, #tpu.memory_space<vmem>>, vector<8x128xf32>
    %c0_5 = arith.constant 0 : index
    %c128 = arith.constant 128 : index
    %3 = vector.load %arg8[%c0_5, %c128] : memref<8x256xf32, #tpu.memory_space<vmem>>, vector<8x128xf32>
    tpu.vector_store %arg8[%c0_5, %c128], %2 {strides = array<i32>} : memref<8x256xf32, #tpu.memory_space<vmem>>, vector<8x128xf32>,
    %c0_6 = arith.constant 0 : index
    %c0_7 = arith.constant 0 : index
    %4 = vector.load %arg8[%c0_6, %c0_7] : memref<8x256xf32, #tpu.memory_space<vmem>>, vector<8x256xf32>
    %c0_8 = arith.constant 0 : index
    %c0_9 = arith.constant 0 : index
    %5 = vector.load %arg3[%c0_8, %c0_9] : memref<256x256xf32, #tpu.memory_space<vmem>>, vector<256x256xf32>
    %cst = arith.constant dense<0.000000e+00> : vector<8x256xf32>
    %6 = tpu.matmul %4, %5, %cst {dimension_numbers = #tpu.dot_dimension_numbers<[1], [1], [0], [0], [0, 0, 1, 0], [], []>} : vector<8x256xf32>, vector<256x256xf32>, vector<8x256xf32> -> vector<8x256xf32>
    %c0_10 = arith.constant 0 : index
    %c0_11 = arith.constant 0 : index
    %7 = vector.load %arg4[%c0_10, %c0_11] : memref<1x256xf32, #tpu.memory_space<vmem>>, vector<1x256xf32>
    %8 = vector.broadcast %7 : vector<1x256xf32> to vector<8x256xf32>
    %9 = arith.addf %6, %8 : vector<8x256xf32>
    %cst_12 = arith.constant 0.000000e+00 : f32
    %10 = vector.broadcast %cst_12 : f32 to vector<8x256xf32>
    %11 = arith.maximumf %9, %10 : vector<8x256xf32>
    %c0_13 = arith.constant 0 : index
    %c0_14 = arith.constant 0 : index
    %12 = vector.load %arg5[%c0_13, %c0_14] : memref<128x256xf32, #tpu.memory_space<vmem>>, vector<128x256xf32>
    %cst_15 = arith.constant dense<0.000000e+00> : vector<8x128xf32>
    %13 = tpu.matmul %11, %12, %cst_15 {dimension_numbers = #tpu.dot_dimension_numbers<[1], [1], [0], [0], [0, 0, 1, 0], [], []>} : vector<8x256xf32>, vector<128x256xf32>, vector<8x128xf32> -> vector<8x128xf32>
    %c0_16 = arith.constant 0 : index
    %c0_17 = arith.constant 0 : index
    %14 = vector.load %arg6[%c0_16, %c0_17] : memref<1x128xf32, #tpu.memory_space<vmem>>, vector<1x128xf32>
    %15 = vector.broadcast %14 : vector<1x128xf32> to vector<8x128xf32>
    %16 = arith.addf %13, %15 : vector<8x128xf32>
    %c0_18 = arith.constant 0 : index
    %c0_19 = arith.constant 0 : index
    %17 = vector.load %arg7[%c0_18, %c0_19] : memref<8x128xf32, #tpu.memory_space<vmem>>, vector<8x128xf32>
    tpu.vector_store %arg7[%c0_18, %c0_19], %16 {strides = array<i32>} : memref<8x128xf32, #tpu.memory_space<vmem>>, vector<8x128xf32>,
    return
  }
  func.func @transform_0(%arg0: i32) -> (i32, i32) {
    %c0_i32 = arith.constant 0 : i32
    %c0_i32_0 = arith.constant 0 : i32
    return %arg0, %c0_i32 : i32, i32
  }
  func.func @transform_1(%arg0: i32) -> (i32, i32) {
    %c0_i32 = arith.constant 0 : i32
    %c0_i32_0 = arith.constant 0 : i32
    return %arg0, %c0_i32 : i32, i32
  }
  func.func @transform_2(%arg0: i32) -> (i32, i32) {
    %c0_i32 = arith.constant 0 : i32
    %c0_i32_0 = arith.constant 0 : i32
    %c0_i32_1 = arith.constant 0 : i32
    return %c0_i32, %c0_i32_0 : i32, i32
  }
  func.func @transform_3(%arg0: i32) -> (i32, i32) {
    %c0_i32 = arith.constant 0 : i32
    %c0_i32_0 = arith.constant 0 : i32
    %c0_i32_1 = arith.constant 0 : i32
    return %c0_i32, %c0_i32_0 : i32, i32
  }
  func.func @transform_4(%arg0: i32) -> (i32, i32) {
    %c0_i32 = arith.constant 0 : i32
    %c0_i32_0 = arith.constant 0 : i32
    %c0_i32_1 = arith.constant 0 : i32
    return %c0_i32, %c0_i32_0 : i32, i32
  }
  func.func @transform_5(%arg0: i32) -> (i32, i32) {
    %c0_i32 = arith.constant 0 : i32
    %c0_i32_0 = arith.constant 0 : i32
    %c0_i32_1 = arith.constant 0 : i32
    return %c0_i32, %c0_i32_0 : i32, i32
  }
  func.func @transform_6(%arg0: i32) -> (i32, i32) {
    %c0_i32 = arith.constant 0 : i32
    %c0_i32_0 = arith.constant 0 : i32
    return %arg0, %c0_i32 : i32, i32
  }
}

</mosaic_0001>

<llo_original>
// kernel: tpu_custom_call.1
$region0: #{tpu_custom_call.1}
  #allocation0 [shape = 'u32[]', space=smem, size = 0x4, offset = 0x4, fixed_abs, tag = 'smem constant byte address 0x4 - core index']
  #allocation1 [shape = 'u32[144,128]{1,0:T(1,128)}', space=vmem, size = 0x12000, scoped, tag = 'internal scratch']
  #allocation2 [shape = 'f32[8,256]{1,0:T(8,128)}', space=vmem, size = 0x2000, scoped, tag = 'scratch operand']
  %s0 = inlined_call_operand.hbm [shape: f32[16,128], index: 0, kind: input, shape index: {}]
  %s1 = inlined_call_operand.hbm [shape: f32[16,128], index: 1, kind: input, shape index: {}]
  %s2 = inlined_call_operand.hbm [shape: f32[256,256], index: 2, kind: input, shape index: {}]
  %s3 = inlined_call_operand.vmem [shape: f32[1,256], index: 3, kind: input, shape index: {}]
  %s4 = inlined_call_operand.hbm [shape: f32[128,256], index: 4, kind: input, shape index: {}]
  %s5 = inlined_call_operand.vmem [shape: f32[1,128], index: 5, kind: input, shape index: {}]
  %s6 = inlined_call_operand.hbm [shape: f32[16,128], index: 6, kind: output, shape index: {}]
  %s7 = sld [smem:[#allocation0]]
  $region73: #{tpu_custom_call.1} parent=0
    _
  %s9 = ssub.s32 1, %s7
  %s10 = scalar_select 0, %s9, %s7
  $region1: #{tpu_custom_call.1} parent=0
    #allocation3 [shape = 'u8[8192]{0}', space=vmem, size = 0x2000, scoped, tag = 'input window, operand 0']
    #allocation4 [shape = 's32[2]{0}', space=sflag, size = 0x8, scoped, tag = 'scoped memory for tpu_custom_call.1']
    #allocation5 [shape = 's32[2]{0}', space=sflag, size = 0x8, scoped, tag = 'scoped memory for tpu_custom_call.1']
    #allocation6 [shape = 'u8[8192]{0}', space=vmem, size = 0x2000, scoped, tag = 'input window, operand 1']
    #allocation7 [shape = 's32[2]{0}', space=sflag, size = 0x8, scoped, tag = 'scoped memory for tpu_custom_call.1']
    #allocation8 [shape = 'u8[262144]{0}', space=vmem, size = 0x40000, scoped, tag = 'input window, operand 2, single buffered']
    #allocation9 [shape = 'u8[131072]{0}', space=vmem, size = 0x20000, scoped, tag = 'input window, operand 4, single buffered']
    #allocation10 [shape = 's32[1]{0}', space=sflag, size = 0x4, scoped, tag = 'scoped memory for tpu_custom_call.1']
    #allocation11 [shape = 'u8[8192]{0}', space=vmem, size = 0x2000, scoped, tag = 'output window, operand 0']
    %11 = vsyncpa [#allocation4], 0
    %s12 = scalar_lea.sflag [#allocation4], 1
    %13 = vsyncpa %s12, 0
    %14 = vsyncpa [#allocation7], 0
    %s15 = scalar_lea.sflag [#allocation7], 1
    %16 = vsyncpa %s15, 0
    %17 = vsyncpa [#allocation10], 0
    %18 = vsyncpa [#allocation5], 0
    %s19 = scalar_lea.sflag [#allocation5], 1
    %20 = vsyncpa %s19, 0
    loop: start=0, step=1, limit=4
    $region2: #{tpu_custom_call.1} parent=1 // loop_pre_header
      _
    $region3: #{tpu_custom_call.1} parent=1 // loop_header
      %s22 = sphi 0, %s26
      %p23 = scmp.ge.s32.totalorder %s22, 4
      %s32 = sphi 0, %s34
      %s35 = sphi 0, %s32
      %s36 = sphi 0, %s35
      %s52 = sphi 0, %s36
      %s58 = sphi 0, %s60
      %s61 = sphi 0, %s58
      %s62 = sphi 0, %s61
      %s78 = sphi 0, %s62
      %s82 = sphi 0, %s82
      %s84 = sphi 0, %s82
      %s85 = sphi 0, %s84
      %s99 = sphi 0, %s85
      %s103 = sphi 0, %s103
      %s105 = sphi 0, %s103
      %s106 = sphi 0, %s105
      %s120 = sphi 0, %s106
      %s124 = sphi 0, %s124
      %s126 = sphi 0, %s124
      %s127 = sphi 0, %s126
      %s141 = sphi 0, %s127
      %s145 = sphi 0, %s145
      %s147 = sphi 0, %s145
      %s148 = sphi 0, %s147
      %s162 = sphi 0, %s148
      %s168 = sphi 0, %s170
      %s171 = sphi 0, %s168
      %s172 = sphi 0, %s171
      %s188 = sphi 0, %s172
    $region4: #{tpu_custom_call.1} parent=1 // loop_header_branch
      %25 = sbr.rel (%p23) target = $region8
    $region5: #{tpu_custom_call.1} parent=1 // loop_body
      %s27 = ssub.s32 %s22, 1
      %s28 = ssub.s32 %s22, 2
      %s29 = sadd.s32 %s22, 1
      %s30 = ssub.s32 %s22, %s29
      %p31 = scmp.eq.s32.totalorder %s30, 0
      %s33 = sadd.s32 %s32, 1
      %s34 = scalar_select %p31, %s32, %s33
      %p37 = pneg %p31
      %p38 = scmp.eq.s32.totalorder %s22, 1
      %p39 = por %p37, %p38
      %p40 = scmp.ne.s32.totalorder %s32, %s35
      %p41 = scmp.eq.s32.totalorder %s22, 0
      %p42 = por %p40, %p41
      %p43 = scmp.ne.s32.totalorder %s32, %s35
      %p44 = scmp.eq.s32.totalorder %s27, 1
      %p45 = por %p43, %p44
      %p46 = scmp.ne.s32.totalorder %s35, %s36
      %p47 = scmp.eq.s32.totalorder %s27, 0
      %p48 = por %p46, %p47
      %p49 = scmp.ne.s32.totalorder %s35, %s36
      %p50 = scmp.eq.s32.totalorder %s28, 1
      %p51 = por %p49, %p50
      %p53 = scmp.ne.s32.totalorder %s36, %s52
      %p54 = scmp.eq.s32.totalorder %s28, 0
      %p55 = por %p53, %p54
      %s56 = ssub.s32 %s22, %s29
      %p57 = scmp.eq.s32.totalorder %s56, 0
      %s59 = sadd.s32 %s58, 1
      %s60 = scalar_select %p57, %s58, %s59
      %p63 = pneg %p57
      %p64 = scmp.eq.s32.totalorder %s22, 1
      %p65 = por %p63, %p64
      %p66 = scmp.ne.s32.totalorder %s58, %s61
      %p67 = scmp.eq.s32.totalorder %s22, 0
      %p68 = por %p66, %p67
      %p69 = scmp.ne.s32.totalorder %s58, %s61
      %p70 = scmp.eq.s32.totalorder %s27, 1
      %p71 = por %p69, %p70
      %p72 = scmp.ne.s32.totalorder %s61, %s62
      %p73 = scmp.eq.s32.totalorder %s27, 0
      %p74 = por %p72, %p73
      %p75 = scmp.ne.s32.totalorder %s61, %s62
      %p76 = scmp.eq.s32.totalorder %s28, 1
      %p77 = por %p75, %p76
      %p79 = scmp.ne.s32.totalorder %s62, %s78
      %p80 = scmp.eq.s32.totalorder %s28, 0
      %p81 = por %p79, %p80
      %s83 = sadd.s32 %s82, 1
      %p86 = scmp.eq.s32.totalorder %s22, 1
      %p87 = scmp.ne.s32.totalorder %s82, %s84
      %p88 = scmp.eq.s32.totalorder %s22, 0
      %p89 = por %p87, %p88
      %p90 = scmp.ne.s32.totalorder %s82, %s84
      %p91 = scmp.eq.s32.totalorder %s27, 1
      %p92 = por %p90, %p91
      %p93 = scmp.ne.s32.totalorder %s84, %s85
      %p94 = scmp.eq.s32.totalorder %s27, 0
      %p95 = por %p93, %p94
      %p96 = scmp.ne.s32.totalorder %s84, %s85
      %p97 = scmp.eq.s32.totalorder %s28, 1
      %p98 = por %p96, %p97
      %p100 = scmp.ne.s32.totalorder %s85, %s99
      %p101 = scmp.eq.s32.totalorder %s28, 0
      %p102 = por %p100, %p101
      %s104 = sadd.s32 %s103, 1
      %p107 = scmp.eq.s32.totalorder %s22, 1
      %p108 = scmp.ne.s32.totalorder %s103, %s105
      %p109 = scmp.eq.s32.totalorder %s22, 0
      %p110 = por %p108, %p109
      %p111 = scmp.ne.s32.totalorder %s103, %s105
      %p112 = scmp.eq.s32.totalorder %s27, 1
      %p113 = por %p111, %p112
      %p114 = scmp.ne.s32.totalorder %s105, %s106
      %p115 = scmp.eq.s32.totalorder %s27, 0
      %p116 = por %p114, %p115
      %p117 = scmp.ne.s32.totalorder %s105, %s106
      %p118 = scmp.eq.s32.totalorder %s28, 1
      %p119 = por %p117, %p118
      %p121 = scmp.ne.s32.totalorder %s106, %s120
      %p122 = scmp.eq.s32.totalorder %s28, 0
      %p123 = por %p121, %p122
      %s125 = sadd.s32 %s124, 1
      %p128 = scmp.eq.s32.totalorder %s22, 1
      %p129 = scmp.ne.s32.totalorder %s124, %s126
      %p130 = scmp.eq.s32.totalorder %s22, 0
      %p131 = por %p129, %p130
      %p132 = scmp.ne.s32.totalorder %s124, %s126
      %p133 = scmp.eq.s32.totalorder %s27, 1
      %p134 = por %p132, %p133
      %p135 = scmp.ne.s32.totalorder %s126, %s127
      %p136 = scmp.eq.s32.totalorder %s27, 0
      %p137 = por %p135, %p136
      %p138 = scmp.ne.s32.totalorder %s126, %s127
      %p139 = scmp.eq.s32.totalorder %s28, 1
      %p140 = por %p138, %p139
      %p142 = scmp.ne.s32.totalorder %s127, %s141
      %p143 = scmp.eq.s32.totalorder %s28, 0
      %p144 = por %p142, %p143
      %s146 = sadd.s32 %s145, 1
      %p149 = scmp.eq.s32.totalorder %s22, 1
      %p150 = scmp.ne.s32.totalorder %s145, %s147
      %p151 = scmp.eq.s32.totalorder %s22, 0
      %p152 = por %p150, %p151
      %p153 = scmp.ne.s32.totalorder %s145, %s147
      %p154 = scmp.eq.s32.totalorder %s27, 1
      %p155 = por %p153, %p154
      %p156 = scmp.ne.s32.totalorder %s147, %s148
      %p157 = scmp.eq.s32.totalorder %s27, 0
      %p158 = por %p156, %p157
      %p159 = scmp.ne.s32.totalorder %s147, %s148
      %p160 = scmp.eq.s32.totalorder %s28, 1
      %p161 = por %p159, %p160
      %p163 = scmp.ne.s32.totalorder %s148, %s162
      %p164 = scmp.eq.s32.totalorder %s28, 0
      %p165 = por %p163, %p164
      %s166 = ssub.s32 %s22, %s29
      %p167 = scmp.eq.s32.totalorder %s166, 0
      %s169 = sadd.s32 %s168, 1
      %s170 = scalar_select %p167, %s168, %s169
      %p173 = pneg %p167
      %p174 = scmp.eq.s32.totalorder %s22, 1
      %p175 = por %p173, %p174
      %p176 = scmp.ne.s32.totalorder %s168, %s171
      %p177 = scmp.eq.s32.totalorder %s22, 0
      %p178 = por %p176, %p177
      %p179 = scmp.ne.s32.totalorder %s168, %s171
      %p180 = scmp.eq.s32.totalorder %s27, 1
      %p181 = por %p179, %p180
      %p182 = scmp.ne.s32.totalorder %s171, %s172
      %p183 = scmp.eq.s32.totalorder %s27, 0
      %p184 = por %p182, %p183
      %p185 = scmp.ne.s32.totalorder %s171, %s172
      %p186 = scmp.eq.s32.totalorder %s28, 1
      %p187 = por %p185, %p186
      %p189 = scmp.ne.s32.totalorder %s172, %s188
      %p190 = scmp.eq.s32.totalorder %s28, 0
      %p191 = por %p189, %p190
      %p192 = scmp.le.s32.totalorder 1, %s22
      %p193 = scmp.lt.s32.totalorder %s22, 3
      %p194 = pnand %p192, %p193
      %p195 = pneg %p194
      // Predicated region
      $region9: #{tpu_custom_call.1} parent=5 // pred_check
        _
      $region10: #{tpu_custom_call.1} parent=5 // pred_check_branch
        %197 = sbr.rel (%p194) target = $region12
      $region11: #{tpu_custom_call.1} parent=5 // pred_region
        %s198 = ssub.s32 %s22, 1
        // Predicated region
        $region13: #{tpu_custom_call.1} parent=11 // pred_check
          %p199 = pneg %p95
        $region14: #{tpu_custom_call.1} parent=11 // pred_check_branch
          %201 = sbr.rel (%p199) target = $region16
        $region15: #{tpu_custom_call.1} parent=11 // pred_region
          %s203 = ssub.s32 8192, 8192
          %204 = vsyncadd [#allocation7], %s203
          %s205 = sshll.u32 [#allocation8], 4
          %s206 = int_to_ptr.vmem [resolvable:$true] %s205
          %211 = dma.hbm_to_vmem [thread:$0]  %s2, 8192, %s206, [#allocation7], 256, 256, 16
        $region16: #{tpu_custom_call.1} parent=11 // pred_fallthru
          _
        // Predicated region
        $region17: #{tpu_custom_call.1} parent=11 // pred_check
          %p212 = pneg %p116
        $region18: #{tpu_custom_call.1} parent=11 // pred_check_branch
          %214 = sbr.rel (%p212) target = $region20
        $region19: #{tpu_custom_call.1} parent=11 // pred_region
          _
        $region20: #{tpu_custom_call.1} parent=11 // pred_fallthru
          _
        // Predicated region
        $region21: #{tpu_custom_call.1} parent=11 // pred_check
          %p215 = pneg %p137
        $region22: #{tpu_custom_call.1} parent=11 // pred_check_branch
          %217 = sbr.rel (%p215) target = $region24
        $region23: #{tpu_custom_call.1} parent=11 // pred_region
          %s219 = ssub.s32 4096, 4096
          %220 = vsyncadd [#allocation10], %s219
          %s221 = sshll.u32 [#allocation9], 4
          %s222 = int_to_ptr.vmem [resolvable:$true] %s221
          %227 = dma.hbm_to_vmem [thread:$0]  %s4, 4096, %s222, [#allocation10], 256, 256, 16
        $region24: #{tpu_custom_call.1} parent=11 // pred_fallthru
          _
        // Predicated region
        $region25: #{tpu_custom_call.1} parent=11 // pred_check
          %p228 = pneg %p158
        $region26: #{tpu_custom_call.1} parent=11 // pred_check_branch
          %230 = sbr.rel (%p228) target = $region28
        $region27: #{tpu_custom_call.1} parent=11 // pred_region
          _
        $region28: #{tpu_custom_call.1} parent=11 // pred_fallthru
          _
      $region12: #{tpu_custom_call.1} parent=5 // pred_fallthru
        _
      %p231 = scmp.lt.s32.totalorder %s22, 2
      // Predicated region
      $region29: #{tpu_custom_call.1} parent=5 // pred_check
        %p232 = pneg %p231
      $region30: #{tpu_custom_call.1} parent=5 // pred_check_branch
        %234 = sbr.rel (%p232) target = $region32
      $region31: #{tpu_custom_call.1} parent=5 // pred_region
        // Predicated region
        $region33: #{tpu_custom_call.1} parent=31 // pred_check
          %p235 = pneg %p42
        $region34: #{tpu_custom_call.1} parent=31 // pred_check_branch
          %237 = sbr.rel (%p235) target = $region36
        $region35: #{tpu_custom_call.1} parent=31 // pred_region
          %s238 = sand.u32 %s32, 1
          %s239 = scalar_lea.sflag [#allocation4], %s238
          %s240 = sand.u32 %s32, 1
          %s241 = smul.addr %s240, 8
          %s242 = scalar_lea.vmem [#allocation3], %s241
          %s244 = ssub.s32 128, 128
          %245 = vsyncadd %s239, %s244
          %s246 = smul.addr %s22, 128
          %s247 = scalar_lea.hbm %s0, %s246
          %s249 = sshll.u32 %s242, 4
          %s250 = int_to_ptr.vmem [resolvable:$true] %s249
          %252 = dma.hbm_to_vmem [thread:$0]  %s247, 128, %s250, %s239
        $region36: #{tpu_custom_call.1} parent=31 // pred_fallthru
          _
        // Predicated region
        $region37: #{tpu_custom_call.1} parent=31 // pred_check
          %p253 = pneg %p68
        $region38: #{tpu_custom_call.1} parent=31 // pred_check_branch
          %255 = sbr.rel (%p253) target = $region40
        $region39: #{tpu_custom_call.1} parent=31 // pred_region
          %s256 = sand.u32 %s22, 1
          %s257 = scalar_lea.sflag [#allocation7], %s256
          %s258 = sand.u32 %s58, 1
          %s259 = smul.addr %s258, 8
          %s260 = scalar_lea.vmem [#allocation6], %s259
          %s262 = ssub.s32 128, 128
          %263 = vsyncadd %s257, %s262
          %s264 = smul.addr %s22, 128
          %s265 = scalar_lea.hbm %s1, %s264
          %s267 = sshll.u32 %s260, 4
          %s268 = int_to_ptr.vmem [resolvable:$true] %s267
          %270 = dma.hbm_to_vmem [thread:$0]  %s265, 128, %s268, %s257
        $region40: #{tpu_custom_call.1} parent=31 // pred_fallthru
          _
      $region32: #{tpu_custom_call.1} parent=5 // pred_fallthru
        _
      %p271 = scmp.le.s32.totalorder 1, %s22
      %p272 = scmp.lt.s32.totalorder %s22, 3
      %p273 = pnand %p271, %p272
      %p274 = pneg %p273
      // Predicated region
      $region41: #{tpu_custom_call.1} parent=5 // pred_check
        _
      $region42: #{tpu_custom_call.1} parent=5 // pred_check_branch
        %276 = sbr.rel (%p273) target = $region44
      $region43: #{tpu_custom_call.1} parent=5 // pred_region
        %s277 = ssub.s32 %s22, 1
        %s278 = sand.u32 %s35, 1
        %s279 = scalar_lea.sflag [#allocation4], %s278
        %s280 = sand.u32 %s35, 1
        %s281 = smul.addr %s280, 8
        %s282 = scalar_lea.vmem [#allocation3], %s281
        // Predicated region
        $region45: #{tpu_custom_call.1} parent=43 // pred_check
          %p283 = pneg %p48
        $region46: #{tpu_custom_call.1} parent=43 // pred_check_branch
          %285 = sbr.rel (%p283) target = $region48
        $region47: #{tpu_custom_call.1} parent=43 // pred_region
          %286 = dma.done %s279, 128
        $region48: #{tpu_custom_call.1} parent=43 // pred_fallthru
          _
        %s287 = sand.u32 %s27, 1
        %s288 = scalar_lea.sflag [#allocation7], %s287
        %s289 = sand.u32 %s61, 1
        %s290 = smul.addr %s289, 8
        %s291 = scalar_lea.vmem [#allocation6], %s290
        // Predicated region
        $region49: #{tpu_custom_call.1} parent=43 // pred_check
          %p292 = pneg %p74
        $region50: #{tpu_custom_call.1} parent=43 // pred_check_branch
          %294 = sbr.rel (%p292) target = $region52
        $region51: #{tpu_custom_call.1} parent=43 // pred_region
          %295 = dma.done %s288, 128
        $region52: #{tpu_custom_call.1} parent=43 // pred_fallthru
          _
        // Predicated region
        $region53: #{tpu_custom_call.1} parent=43 // pred_check
          %p296 = pneg %p95
        $region54: #{tpu_custom_call.1} parent=43 // pred_check_branch
          %298 = sbr.rel (%p296) target = $region56
        $region55: #{tpu_custom_call.1} parent=43 // pred_region
          %299 = dma.done [#allocation7], 8192
        $region56: #{tpu_custom_call.1} parent=43 // pred_fallthru
          _
        // Predicated region
        $region57: #{tpu_custom_call.1} parent=43 // pred_check
          %p300 = pneg %p137
        $region58: #{tpu_custom_call.1} parent=43 // pred_check_branch
          %302 = sbr.rel (%p300) target = $region60
        $region59: #{tpu_custom_call.1} parent=43 // pred_region
          %303 = dma.done [#allocation10], 4096
        $region60: #{tpu_custom_call.1} parent=43 // pred_fallthru
          _
        %s304 = sand.u32 %s35, 1
        %s305 = scalar_lea.sflag [#allocation4], %s304
        %s306 = sand.u32 %s35, 1
        %s307 = smul.addr %s306, 8
        %s308 = scalar_lea.vmem [#allocation3], %s307
        %p309 = pneg %p48
        %p310 = pneg %p45
        %s311 = sand.u32 %s27, 1
        %s312 = scalar_lea.sflag [#allocation7], %s311
        %s313 = sand.u32 %s61, 1
        %s314 = smul.addr %s313, 8
        %s315 = scalar_lea.vmem [#allocation6], %s314
        %p316 = pneg %p74
        %p317 = pneg %p71
        %p318 = pneg %p95
        %p319 = pneg %p92
        %p320 = pneg %p116
        %p321 = pneg %p113
        %p322 = pneg %p137
        %p323 = pneg %p134
        %p324 = pneg %p158
        %p325 = pneg %p155
        %p326 = pneg %p184
        %p327 = pneg %p181
        %s328 = sand.u32 %s171, 1
        %s329 = scalar_lea.sflag [#allocation5], %s328
        %s330 = sand.u32 %s171, 1
        %s331 = smul.addr %s330, 8
        %s332 = scalar_lea.vmem [#allocation11], %s331
        %v333 = vld [vmem:[%s282] sm:$0xff]
        %334 = vst [vmem:[#allocation2] sm:$0xff] %v333
        %v335 = vld [vmem:[%s291] sm:$0xff]
        %336 = vst [vmem:[#allocation2 + $0x8] sm:$0xff] %v335
        %v337 = vld [vmem:[#allocation2] sm:$0xff]
        %v338 = vld [vmem:[#allocation2 + $0x8] sm:$0xff]
        %v339 = vld [vmem:[#allocation8] sm:$0xff]
        %v340 = vld [vmem:[#allocation8 + $0x8] sm:$0xff]
        %v341 = vld [vmem:[#allocation8 + $0x10] sm:$0xff]
        %v342 = vld [vmem:[#allocation8 + $0x18] sm:$0xff]
        %v343 = vld [vmem:[#allocation8 + $0x20] sm:$0xff]
        %v344 = vld [vmem:[#allocation8 + $0x28] sm:$0xff]
        %v345 = vld [vmem:[#allocation8 + $0x30] sm:$0xff]
        %v346 = vld [vmem:[#allocation8 + $0x38] sm:$0xff]
        %v347 = vld [vmem:[#allocation8 + $0x40] sm:$0xff]
        %v348 = vld [vmem:[#allocation8 + $0x48] sm:$0xff]
        %v349 = vld [vmem:[#allocation8 + $0x50] sm:$0xff]
        %v350 = vld [vmem:[#allocation8 + $0x58] sm:$0xff]
        %v351 = vld [vmem:[#allocation8 + $0x60] sm:$0xff]
        %v352 = vld [vmem:[#allocation8 + $0x68] sm:$0xff]
        %v353 = vld [vmem:[#allocation8 + $0x70] sm:$0xff]
        %v354 = vld [vmem:[#allocation8 + $0x78] sm:$0xff]
        %v355 = vld [vmem:[#allocation8 + $0x80] sm:$0xff]
        %v356 = vld [vmem:[#allocation8 + $0x88] sm:$0xff]
        %v357 = vld [vmem:[#allocation8 + $0x90] sm:$0xff]
        %v358 = vld [vmem:[#allocation8 + $0x98] sm:$0xff]
        %v359 = vld [vmem:[#allocation8 + $0xa0] sm:$0xff]
        %v360 = vld [vmem:[#allocation8 + $0xa8] sm:$0xff]
        %v361 = vld [vmem:[#allocation8 + $0xb0] sm:$0xff]
        %v362 = vld [vmem:[#allocation8 + $0xb8] sm:$0xff]
        %v363 = vld [vmem:[#allocation8 + $0xc0] sm:$0xff]
        %v364 = vld [vmem:[#allocation8 + $0xc8] sm:$0xff]
        %v365 = vld [vmem:[#allocation8 + $0xd0] sm:$0xff]
        %v366 = vld [vmem:[#allocation8 + $0xd8] sm:$0xff]
        %v367 = vld [vmem:[#allocation8 + $0xe0] sm:$0xff]
        %v368 = vld [vmem:[#allocation8 + $0xe8] sm:$0xff]
        %v369 = vld [vmem:[#allocation8 + $0xf0] sm:$0xff]
        %v370 = vld [vmem:[#allocation8 + $0xf8] sm:$0xff]
        %v371 = vld [vmem:[#allocation8 + $0x100] sm:$0xff]
        %v372 = vld [vmem:[#allocation8 + $0x108] sm:$0xff]
        %v373 = vld [vmem:[#allocation8 + $0x110] sm:$0xff]
        %v374 = vld [vmem:[#allocation8 + $0x118] sm:$0xff]
        %v375 = vld [vmem:[#allocation8 + $0x120] sm:$0xff]
        %v376 = vld [vmem:[#allocation8 + $0x128] sm:$0xff]
        %v377 = vld [vmem:[#allocation8 + $0x130] sm:$0xff]
        %v378 = vld [vmem:[#allocation8 + $0x138] sm:$0xff]
        %v379 = vld [vmem:[#allocation8 + $0x140] sm:$0xff]
        %v380 = vld [vmem:[#allocation8 + $0x148] sm:$0xff]
        %v381 = vld [vmem:[#allocation8 + $0x150] sm:$0xff]
        %v382 = vld [vmem:[#allocation8 + $0x158] sm:$0xff]
        %v383 = vld [vmem:[#allocation8 + $0x160] sm:$0xff]
        %v384 = vld [vmem:[#allocation8 + $0x168] sm:$0xff]
        %v385 = vld [vmem:[#allocation8 + $0x170] sm:$0xff]
        %v386 = vld [vmem:[#allocation8 + $0x178] sm:$0xff]
        %v387 = vld [vmem:[#allocation8 + $0x180] sm:$0xff]
        %v388 = vld [vmem:[#allocation8 + $0x188] sm:$0xff]
        %v389 = vld [vmem:[#allocation8 + $0x190] sm:$0xff]
        %v390 = vld [vmem:[#allocation8 + $0x198] sm:$0xff]
        %v391 = vld [vmem:[#allocation8 + $0x1a0] sm:$0xff]
        %v392 = vld [vmem:[#allocation8 + $0x1a8] sm:$0xff]
        %v393 = vld [vmem:[#allocation8 + $0x1b0] sm:$0xff]
        %v394 = vld [vmem:[#allocation8 + $0x1b8] sm:$0xff]
        %v395 = vld [vmem:[#allocation8 + $0x1c0] sm:$0xff]
        %v396 = vld [vmem:[#allocation8 + $0x1c8] sm:$0xff]
        %v397 = vld [vmem:[#allocation8 + $0x1d0] sm:$0xff]
        %v398 = vld [vmem:[#allocation8 + $0x1d8] sm:$0xff]
        %v399 = vld [vmem:[#allocation8 + $0x1e0] sm:$0xff]
        %v400 = vld [vmem:[#allocation8 + $0x1e8] sm:$0xff]
        %v401 = vld [vmem:[#allocation8 + $0x1f0] sm:$0xff]
        %v402 = vld [vmem:[#allocation8 + $0x1f8] sm:$0xff]
        %v403 = vld [vmem:[%s3] sm:$0x3]
        %v405 = vlaneseq
        %v406 = vshrl.u32 %v405, 7
        %v407 = vsub.s32 0, %v406
        %v408 = vrot.slane %v403, %v407
        %v409 = vlaneseq
        %v410 = vshrl.u32 %v409, 7
        %v411 = vsub.s32 1, %v410
        %v412 = vrot.slane %v403, %v411
        %415 = vmatprep.subr.mxu0 %v340
        %416 = vmatpush1.xpose.msra.mxu0 %v339
        %417 = vmatprep.subr.mxu0 %v342
        %418 = vmatpush1.xpose.msra.mxu0 %v341
        %419 = vmatprep.subr.mxu0 %v344
        %420 = vmatpush1.xpose.msra.mxu0 %v343
        %421 = vmatprep.subr.mxu0 %v346
        %422 = vmatpush1.xpose.msra.mxu0 %v345
        %423 = vmatprep.subr.mxu0 %v348
        %424 = vmatpush1.xpose.msra.mxu0 %v347
        %425 = vmatprep.subr.mxu0 %v350
        %426 = vmatpush1.xpose.msra.mxu0 %v349
        %427 = vmatprep.subr.mxu0 %v352
        %428 = vmatpush1.xpose.msra.mxu0 %v351
        %429 = vmatprep.subr.mxu0 %v354
        %430 = vmatpush1.xpose.msra.mxu0 %v353
        %431 = vmatprep.subr.mxu0 %v356
        %432 = vmatpush1.xpose.msra.mxu0 %v355
        %433 = vmatprep.subr.mxu0 %v358
        %434 = vmatpush1.xpose.msra.mxu0 %v357
        %435 = vmatprep.subr.mxu0 %v360
        %436 = vmatpush1.xpose.msra.mxu0 %v359
        %437 = vmatprep.subr.mxu0 %v362
        %438 = vmatpush1.xpose.msra.mxu0 %v361
        %439 = vmatprep.subr.mxu0 %v364
        %440 = vmatpush1.xpose.msra.mxu0 %v363
        %441 = vmatprep.subr.mxu0 %v366
        %442 = vmatpush1.xpose.msra.mxu0 %v365
        %443 = vmatprep.subr.mxu0 %v368
        %444 = vmatpush1.xpose.msra.mxu0 %v367
        %445 = vmatprep.subr.mxu0 %v370
        %446 = vmatpush1.xpose.msra.mxu0 %v369
        %447 = vmatprep.subr.mxu0 %v372
        %448 = vmatpush1.xpose.msra.mxu0 %v371
        %449 = vmatprep.subr.mxu0 %v374
        %450 = vmatpush1.xpose.msra.mxu0 %v373
        %451 = vmatprep.subr.mxu0 %v376
        %452 = vmatpush1.xpose.msra.mxu0 %v375
        %453 = vmatprep.subr.mxu0 %v378
        %454 = vmatpush1.xpose.msra.mxu0 %v377
        %455 = vmatprep.subr.mxu0 %v380
        %456 = vmatpush1.xpose.msra.mxu0 %v379
        %457 = vmatprep.subr.mxu0 %v382
        %458 = vmatpush1.xpose.msra.mxu0 %v381
        %459 = vmatprep.subr.mxu0 %v384
        %460 = vmatpush1.xpose.msra.mxu0 %v383
        %461 = vmatprep.subr.mxu0 %v386
        %462 = vmatpush1.xpose.msra.mxu0 %v385
        %463 = vmatprep.subr.mxu0 %v388
        %464 = vmatpush1.xpose.msra.mxu0 %v387
        %465 = vmatprep.subr.mxu0 %v390
        %466 = vmatpush1.xpose.msra.mxu0 %v389
        %467 = vmatprep.subr.mxu0 %v392
        %468 = vmatpush1.xpose.msra.mxu0 %v391
        %469 = vmatprep.subr.mxu0 %v394
        %470 = vmatpush1.xpose.msra.mxu0 %v393
        %471 = vmatprep.subr.mxu0 %v396
        %472 = vmatpush1.xpose.msra.mxu0 %v395
        %473 = vmatprep.subr.mxu0 %v398
        %474 = vmatpush1.xpose.msra.mxu0 %v397
        %475 = vmatprep.subr.mxu0 %v400
        %476 = vmatpush1.xpose.msra.mxu0 %v399
        %477 = vmatprep.subr.mxu0 %v402
        %478 = vmatpush1.xpose.msra.mxu0 %v401
        %479 = vmatprep.mubr.f32.mxu0 %v338
        %480 = vmatmul.mubr.f32.gmra.mrb[0].mxu0 %v337
        %v481 = vpop.f32.mrb[0].mxu0
        %v482 = vadd.f32 %v408, %v481
        %v483 = vpop.f32.mrb[0].mxu0
        %v484 = vadd.f32 %v412, %v483
        %485 = vdwg.mxu0
        %v486 = vmax.f32 %v482, 0.0
        %v487 = vmax.f32 %v484, 0.0
        %v488 = vld [vmem:[#allocation9] sm:$0xff]
        %v489 = vld [vmem:[#allocation9 + $0x8] sm:$0xff]
        %v490 = vld [vmem:[#allocation9 + $0x10] sm:$0xff]
        %v491 = vld [vmem:[#allocation9 + $0x18] sm:$0xff]
        %v492 = vld [vmem:[#allocation9 + $0x20] sm:$0xff]
        %v493 = vld [vmem:[#allocation9 + $0x28] sm:$0xff]
        %v494 = vld [vmem:[#allocation9 + $0x30] sm:$0xff]
        %v495 = vld [vmem:[#allocation9 + $0x38] sm:$0xff]
        %v496 = vld [vmem:[#allocation9 + $0x40] sm:$0xff]
        %v497 = vld [vmem:[#allocation9 + $0x48] sm:$0xff]
        %v498 = vld [vmem:[#allocation9 + $0x50] sm:$0xff]
        %v499 = vld [vmem:[#allocation9 + $0x58] sm:$0xff]
        %v500 = vld [vmem:[#allocation9 + $0x60] sm:$0xff]
        %v501 = vld [vmem:[#allocation9 + $0x68] sm:$0xff]
        %v502 = vld [vmem:[#allocation9 + $0x70] sm:$0xff]
        %v503 = vld [vmem:[#allocation9 + $0x78] sm:$0xff]
        %v504 = vld [vmem:[#allocation9 + $0x80] sm:$0xff]
        %v505 = vld [vmem:[#allocation9 + $0x88] sm:$0xff]
        %v506 = vld [vmem:[#allocation9 + $0x90] sm:$0xff]
        %v507 = vld [vmem:[#allocation9 + $0x98] sm:$0xff]
        %v508 = vld [vmem:[#allocation9 + $0xa0] sm:$0xff]
        %v509 = vld [vmem:[#allocation9 + $0xa8] sm:$0xff]
        %v510 = vld [vmem:[#allocation9 + $0xb0] sm:$0xff]
        %v511 = vld [vmem:[#allocation9 + $0xb8] sm:$0xff]
        %v512 = vld [vmem:[#allocation9 + $0xc0] sm:$0xff]
        %v513 = vld [vmem:[#allocation9 + $0xc8] sm:$0xff]
        %v514 = vld [vmem:[#allocation9 + $0xd0] sm:$0xff]
        %v515 = vld [vmem:[#allocation9 + $0xd8] sm:$0xff]
        %v516 = vld [vmem:[#allocation9 + $0xe0] sm:$0xff]
        %v517 = vld [vmem:[#allocation9 + $0xe8] sm:$0xff]
        %v518 = vld [vmem:[#allocation9 + $0xf0] sm:$0xff]
        %v519 = vld [vmem:[#allocation9 + $0xf8] sm:$0xff]
        %v520 = vld [vmem:[%s5] sm:$0x1]
        %v522 = vlaneseq
        %v523 = vshrl.u32 %v522, 7
        %v524 = vsub.s32 0, %v523
        %v525 = vrot.slane %v520, %v524
        %527 = vmatprep.subr.mxu0 %v489
        %528 = vmatpush1.xpose.msra.mxu0 %v488
        %529 = vmatprep.subr.mxu0 %v491
        %530 = vmatpush1.xpose.msra.mxu0 %v490
        %531 = vmatprep.subr.mxu0 %v493
        %532 = vmatpush1.xpose.msra.mxu0 %v492
        %533 = vmatprep.subr.mxu0 %v495
        %534 = vmatpush1.xpose.msra.mxu0 %v494
        %535 = vmatprep.subr.mxu0 %v497
        %536 = vmatpush1.xpose.msra.mxu0 %v496
        %537 = vmatprep.subr.mxu0 %v499
        %538 = vmatpush1.xpose.msra.mxu0 %v498
        %539 = vmatprep.subr.mxu0 %v501
        %540 = vmatpush1.xpose.msra.mxu0 %v500
        %541 = vmatprep.subr.mxu0 %v503
        %542 = vmatpush1.xpose.msra.mxu0 %v502
        %543 = vmatprep.subr.mxu0 %v505
        %544 = vmatpush1.xpose.msra.mxu0 %v504
        %545 = vmatprep.subr.mxu0 %v507
        %546 = vmatpush1.xpose.msra.mxu0 %v506
        %547 = vmatprep.subr.mxu0 %v509
        %548 = vmatpush1.xpose.msra.mxu0 %v508
        %549 = vmatprep.subr.mxu0 %v511
        %550 = vmatpush1.xpose.msra.mxu0 %v510
        %551 = vmatprep.subr.mxu0 %v513
        %552 = vmatpush1.xpose.msra.mxu0 %v512
        %553 = vmatprep.subr.mxu0 %v515
        %554 = vmatpush1.xpose.msra.mxu0 %v514
        %555 = vmatprep.subr.mxu0 %v517
        %556 = vmatpush1.xpose.msra.mxu0 %v516
        %557 = vmatprep.subr.mxu0 %v519
        %558 = vmatpush1.xpose.msra.mxu0 %v518
        %559 = vmatprep.subr.mxu0 0.0
        %560 = vmatpush1.xpose.msra.mxu0 0.0
        %561 = vmatprep.subr.mxu0 0.0
        %562 = vmatpush1.xpose.msra.mxu0 0.0
        %563 = vmatprep.subr.mxu0 0.0
        %564 = vmatpush1.xpose.msra.mxu0 0.0
        %565 = vmatprep.subr.mxu0 0.0
        %566 = vmatpush1.xpose.msra.mxu0 0.0
        %567 = vmatprep.subr.mxu0 0.0
        %568 = vmatpush1.xpose.msra.mxu0 0.0
        %569 = vmatprep.subr.mxu0 0.0
        %570 = vmatpush1.xpose.msra.mxu0 0.0
        %571 = vmatprep.subr.mxu0 0.0
        %572 = vmatpush1.xpose.msra.mxu0 0.0
        %573 = vmatprep.subr.mxu0 0.0
        %574 = vmatpush1.xpose.msra.mxu0 0.0
        %575 = vmatprep.subr.mxu0 0.0
        %576 = vmatpush1.xpose.msra.mxu0 0.0
        %577 = vmatprep.subr.mxu0 0.0
        %578 = vmatpush1.xpose.msra.mxu0 0.0
        %579 = vmatprep.subr.mxu0 0.0
        %580 = vmatpush1.xpose.msra.mxu0 0.0
        %581 = vmatprep.subr.mxu0 0.0
        %582 = vmatpush1.xpose.msra.mxu0 0.0
        %583 = vmatprep.subr.mxu0 0.0
        %584 = vmatpush1.xpose.msra.mxu0 0.0
        %585 = vmatprep.subr.mxu0 0.0
        %586 = vmatpush1.xpose.msra.mxu0 0.0
        %587 = vmatprep.subr.mxu0 0.0
        %588 = vmatpush1.xpose.msra.mxu0 0.0
        %589 = vmatprep.subr.mxu0 0.0
        %590 = vmatpush1.xpose.msra.mxu0 0.0
        %591 = vmatprep.mubr.f32.mxu0 %v487
        %592 = vmatmul.mubr.f32.gmra.mrb[0].mxu0 %v486
        %v593 = vpop.f32.mrb[0].mxu0
        %v594 = vadd.f32 %v525, %v593
        %v595 = vpop.f32.mrb[0].mxu0
        %596 = vdwg.mxu0
        %597 = vst [vmem:[%s332] sm:$0xff] %v594
        %s598 = sand.u32 %s171, 1
        %s599 = scalar_lea.sflag [#allocation5], %s598
        %s600 = sand.u32 %s171, 1
        %s601 = smul.addr %s600, 8
        %s602 = scalar_lea.vmem [#allocation11], %s601
        // Predicated region
        $region61: #{tpu_custom_call.1} parent=43 // pred_check
          %p603 = pneg %p181
        $region62: #{tpu_custom_call.1} parent=43 // pred_check_branch
          %605 = sbr.rel (%p603) target = $region64
        $region63: #{tpu_custom_call.1} parent=43 // pred_region
          %s607 = ssub.s32 128, 128
          %608 = vsyncadd %s599, %s607
          %s609 = smul.addr %s27, 128
          %s610 = scalar_lea.hbm %s6, %s609
          %s612 = sshll.u32 %s602, 4
          %s613 = int_to_ptr.vmem [resolvable:$true] %s612
          %615 = dma.vmem_to_hbm [thread:$0]  %s613, 128, %s610, %s599
        $region64: #{tpu_custom_call.1} parent=43 // pred_fallthru
          _
      $region44: #{tpu_custom_call.1} parent=5 // pred_fallthru
        _
      %p616 = scmp.le.s32.totalorder 2, %s22
      // Predicated region
      $region65: #{tpu_custom_call.1} parent=5 // pred_check
        %p617 = pneg %p616
      $region66: #{tpu_custom_call.1} parent=5 // pred_check_branch
        %619 = sbr.rel (%p617) target = $region68
      $region67: #{tpu_custom_call.1} parent=5 // pred_region
        %s620 = ssub.s32 %s22, 2
        // Predicated region
        $region69: #{tpu_custom_call.1} parent=67 // pred_check
          %p621 = pneg %p187
        $region70: #{tpu_custom_call.1} parent=67 // pred_check_branch
          %623 = sbr.rel (%p621) target = $region72
        $region71: #{tpu_custom_call.1} parent=67 // pred_region
          %s624 = sand.u32 %s172, 1
          %s625 = scalar_lea.sflag [#allocation5], %s624
          %s626 = sand.u32 %s172, 1
          %s627 = smul.addr %s626, 8
          %s628 = scalar_lea.vmem [#allocation11], %s627
          %629 = dma.done %s625, 128
        $region72: #{tpu_custom_call.1} parent=67 // pred_fallthru
          _
      $region68: #{tpu_custom_call.1} parent=5 // pred_fallthru
        _
    $region6: #{tpu_custom_call.1} parent=1 // loop_footer
      %s26 = sadd.s32 1, %s22
    $region7: #{tpu_custom_call.1} parent=1 // loop_footer_branch
      %21 = sbr.rel target = $region3
    $region8: #{tpu_custom_call.1} parent=1 // loop_exit
      _
    %630 = vsyncpa [#allocation4], 1
    %s631 = scalar_lea.sflag [#allocation4], 1
    %632 = vsyncpa %s631, 1
    %633 = vsyncpa [#allocation7], 1
    %s634 = scalar_lea.sflag [#allocation7], 1
    %635 = vsyncpa %s634, 1
    %636 = vsyncpa [#allocation10], 1
    %637 = vsyncpa [#allocation5], 1
    %s638 = scalar_lea.sflag [#allocation5], 1
    %639 = vsyncpa %s638, 1

</llo_original>
